<compile_context>
chip_gen: v7x
topology: tpu7x:2x2x1
jax: 0.10.0
libtpu: 0.0.40
codegen_flags: <defaults>
</compile_context>

<pallas_src>
import jax
import jax.numpy as jnp
from jax.experimental import pallas as pl
from jax.experimental.pallas import tpu as pltpu

Y0 = 2.0  # deterministic stand-in for args.y0 (parameter init scale)


def _toy_y_kernel(x_ref, yneg_ref, o_ref):
    # x_ref: (TB, TD) tile; yneg_ref: (1, TD) pre-negated parameter row
    # (sublane-broadcast in the multiply); o_ref: (TB, TD).
    # sin(x * (-y)) == -sin(x * y)  -> no per-element negate on the big stream.
    o_ref[...] = jnp.sin(x_ref[...] * yneg_ref[...])


def _round_up(n, m):
    return ((n + m - 1) // m) * m


def toy_y_forward(x, toy_y=None, y=None, *,
                  max_block_bytes=8 * 1024 * 1024,
                  vmem_limit_bytes=48 * 1024 * 1024):
    """Reproduces Toy_y.forward with a Pallas TPU kernel.

    x:      (B, D) float32
    toy_y:  (D,)   float32 parameter (used when y is None)
    y:      (D,)   float32 optional override (matches `forward(x, y)`)
    """
    B, D = x.shape
    mult = toy_y if y is None else y
    if mult is None:
        raise ValueError("either toy_y (the parameter) or y must be provided")

    # Pre-negate the tiny (D,) operand in the wrapper; saves one VALU op per
    # element of the (B, D) stream inside the kernel.
    yneg = (-jnp.asarray(mult)).astype(x.dtype).reshape(1, D)

    itemsize = jnp.dtype(x.dtype).itemsize
    b_aligned = _round_up(B, 8)
    d_aligned = _round_up(D, 128)

    # ---- Tile selection (no array padding; ragged last blocks are masked) --
    # Lane tile: prefer the full (128-aligned) row width so the (1, td)
    # parameter block index never changes (fetched once) and the grid is
    # effectively 1-D over row blocks.
    if d_aligned * 8 * itemsize <= max_block_bytes:
        td = d_aligned
    else:
        td = (max_block_bytes // (8 * itemsize)) // 128 * 128
        td = max(128, min(td, d_aligned))

    # Sublane tile: fill the block budget; keep it a multiple of 8.
    tb = (max_block_bytes // (td * itemsize)) // 8 * 8
    tb = max(8, min(tb, b_aligned))

    grid_b = pl.cdiv(B, tb)
    grid_d = pl.cdiv(D, td)

    # v7x has two TensorCores: make sure at least one "parallel" axis has >= 2
    # blocks when the row axis is big enough to split.
    if grid_b == 1 and grid_d == 1 and b_aligned >= 16:
        tb = _round_up(pl.cdiv(b_aligned, 2), 8)
        grid_b = pl.cdiv(B, tb)

    # ---- Advisory cost (reflects true boundary-padded traffic) -------------
    padded_elems = (grid_b * tb) * (grid_d * td)
    cost = pl.CostEstimate(
        flops=padded_elems,                                   # the multiply
        transcendentals=padded_elems,                         # sin
        bytes_accessed=2 * padded_elems * itemsize + grid_d * td * itemsize,
    )

    out = pl.pallas_call(
        _toy_y_kernel,
        out_shape=jax.ShapeDtypeStruct((B, D), x.dtype),
        grid_spec=pltpu.PrefetchScalarGridSpec(
            num_scalar_prefetch=0,
            grid=(grid_b, grid_d),
            in_specs=[
                pl.BlockSpec((tb, td), lambda i, j: (i, j)),   # x tile
                pl.BlockSpec((1, td), lambda i, j: (0, j)),    # broadcast row
            ],
            out_specs=pl.BlockSpec((tb, td), lambda i, j: (i, j)),
        ),
        compiler_params=pltpu.CompilerParams(
            dimension_semantics=("parallel", "parallel"),
            vmem_limit_bytes=vmem_limit_bytes,
        ),
        cost_estimate=cost,
    )(x, yneg)
    return out


if __name__ == "__main__":
    key = jax.random.PRNGKey(0)
    B, D = 8, 128  # small demo shapes; D maps to the 128-lane axis

    x = jax.random.normal(key, (B, D), dtype=jnp.float32)

    # Parameter init: toy_y = y0 * ones(d)  (deterministic, as in __init__)
    toy_y = Y0 * jnp.ones((D,), dtype=jnp.float32)

    # Branch 1: y is None -> -sin(x * toy_y)
    out1 = toy_y_forward(x, toy_y=toy_y)
    jax.block_until_ready(out1)

    # Branch 2: explicit y -> -sin(x * y)
    y_alt = jnp.linspace(0.5, 1.5, D, dtype=jnp.float32)
    out2 = toy_y_forward(x, toy_y=toy_y, y=y_alt)
    jax.block_until_ready(out2)

    # Ragged path: unaligned B and D, handled in-kernel (no wrapper pad/slice).
    B2, D2 = 37, 200
    x2 = jax.random.normal(jax.random.PRNGKey(1), (B2, D2), dtype=jnp.float32)
    toy_y2 = Y0 * jnp.ones((D2,), dtype=jnp.float32)
    out3 = toy_y_forward(x2, toy_y=toy_y2)
    jax.block_until_ready(out3)

    # Reference checks against plain JAX semantics of the PyTorch forward
    ref1 = -jnp.sin(x * toy_y[None, :])
    ref2 = -jnp.sin(x * y_alt[None, :])
    ref3 = -jnp.sin(x2 * toy_y2[None, :])
    assert jnp.allclose(out1, ref1, atol=1e-6), "branch 1 mismatch"
    assert jnp.allclose(out2, ref2, atol=1e-6), "branch 2 mismatch"
    assert jnp.allclose(out3, ref3, atol=1e-6), "ragged-path mismatch"

    print("KERNEL_OK")
</pallas_src>

<mosaic_0001>
module attributes {stable_mosaic.version = 11 : i64} {
  func.func @_toy_y_kernel(%arg0: i32, %arg1: i32, %arg2: memref<8x128xf32, #tpu.memory_space<vmem>>, %arg3: memref<1x128xf32, #tpu.memory_space<vmem>>, %arg4: memref<8x128xf32, #tpu.memory_space<vmem>>) attributes {dimension_semantics = [#tpu.dimension_semantics<parallel>, #tpu.dimension_semantics<parallel>], iteration_bounds = array<i64: 1, 1>, scalar_prefetch = 0 : i64, scratch_operands = 0 : i64, tpu.core_type = #tpu.core_type<tc>, window_params = [{transform_indices = @transform_0, window_bounds = array<i64: 8, 128>}, {transform_indices = @transform_1, window_bounds = array<i64: 1, 128>}, {transform_indices = @transform_2, window_bounds = array<i64: 8, 128>}]} {
    %c0 = arith.constant 0 : index
    %c0_0 = arith.constant 0 : index
    %0 = vector.load %arg2[%c0, %c0_0] : memref<8x128xf32, #tpu.memory_space<vmem>>, vector<8x128xf32>
    %c0_1 = arith.constant 0 : index
    %c0_2 = arith.constant 0 : index
    %1 = vector.load %arg3[%c0_1, %c0_2] : memref<1x128xf32, #tpu.memory_space<vmem>>, vector<1x128xf32>
    %2 = vector.broadcast %1 : vector<1x128xf32> to vector<8x128xf32>
    %3 = arith.mulf %0, %2 : vector<8x128xf32>
    %4 = math.sin %3 : vector<8x128xf32>
    %c0_3 = arith.constant 0 : index
    %c0_4 = arith.constant 0 : index
    %5 = vector.load %arg4[%c0_3, %c0_4] : memref<8x128xf32, #tpu.memory_space<vmem>>, vector<8x128xf32>
    tpu.vector_store %arg4[%c0_3, %c0_4], %4 {strides = array<i32>} : memref<8x128xf32, #tpu.memory_space<vmem>>, vector<8x128xf32>,
    return
  }
  func.func @transform_0(%arg0: i32, %arg1: i32) -> (i32, i32) {
    %c0_i32 = arith.constant 0 : i32
    return %arg0, %arg1 : i32, i32
  }
  func.func @transform_1(%arg0: i32, %arg1: i32) -> (i32, i32) {
    %c0_i32 = arith.constant 0 : i32
    %c0_i32_0 = arith.constant 0 : i32
    return %c0_i32, %arg1 : i32, i32
  }
  func.func @transform_2(%arg0: i32, %arg1: i32) -> (i32, i32) {
    %c0_i32 = arith.constant 0 : i32
    return %arg0, %arg1 : i32, i32
  }
}

</mosaic_0001>

<llo_original>
// kernel: tpu_custom_call.1
$region0: #{tpu_custom_call.1}
  #allocation0 [shape = 'u32[]', space=smem, size = 0x4, offset = 0x4, fixed_abs, tag = 'smem constant byte address 0x4 - core index']
  #allocation1 [shape = 'u32[144,128]{1,0:T(1,128)}', space=vmem, size = 0x12000, scoped, tag = 'internal scratch']
  %s0 = inlined_call_operand.hbm [shape: f32[8,128], index: 0, kind: input, shape index: {}]
  %s1 = inlined_call_operand.vmem [shape: f32[1,128], index: 1, kind: input, shape index: {}]
  %s2 = inlined_call_operand.hbm [shape: f32[8,128], index: 2, kind: output, shape index: {}]
  %s3 = sld [smem:[#allocation0]]
  $region22: #{tpu_custom_call.1} parent=0
    _
  %s5 = ssub.s32 1, %s3
  %s6 = scalar_select 0, %s5, %s3
  $region1: #{tpu_custom_call.1} parent=0
    #allocation2 [shape = 'u8[4096]{0}', space=vmem, size = 0x1000, scoped, tag = 'input window, operand 0, single buffered']
    #allocation3 [shape = 's32[1]{0}', space=sflag, size = 0x4, scoped, tag = 'scoped memory for tpu_custom_call.1']
    #allocation4 [shape = 's32[1]{0}', space=sflag, size = 0x4, scoped, tag = 'scoped memory for tpu_custom_call.1']
    #allocation5 [shape = 'u8[4096]{0}', space=vmem, size = 0x1000, scoped, tag = 'output window, operand 0, single buffered']
    %7 = vsyncpa [#allocation3], 0
    %8 = vsyncpa [#allocation4], 0
    // Predicated region
    $region2: #{tpu_custom_call.1} parent=1 // pred_check
      _
    $region3: #{tpu_custom_call.1} parent=1 // pred_check_branch
      %10 = sbr.rel (0) target = $region5
    $region4: #{tpu_custom_call.1} parent=1 // pred_region
      %s12 = ssub.s32 128, 128
      %13 = vsyncadd [#allocation3], %s12
      %s15 = sshll.u32 [#allocation2], 4
      %s16 = int_to_ptr.vmem [resolvable:$true] %s15
      %18 = dma.hbm_to_vmem [thread:$0]  %s0, 128, %s16, [#allocation3]
    $region5: #{tpu_custom_call.1} parent=1 // pred_fallthru
      _
    // Predicated region
    $region6: #{tpu_custom_call.1} parent=1 // pred_check
      _
    $region7: #{tpu_custom_call.1} parent=1 // pred_check_branch
      %20 = sbr.rel (0) target = $region9
    $region8: #{tpu_custom_call.1} parent=1 // pred_region
      _
    $region9: #{tpu_custom_call.1} parent=1 // pred_fallthru
      _
    // Predicated region
    $region10: #{tpu_custom_call.1} parent=1 // pred_check
      _
    $region11: #{tpu_custom_call.1} parent=1 // pred_check_branch
      %22 = sbr.rel (0) target = $region13
    $region12: #{tpu_custom_call.1} parent=1 // pred_region
      %23 = dma.done [#allocation3], 128
    $region13: #{tpu_custom_call.1} parent=1 // pred_fallthru
      _
    %v24 = vld [vmem:[#allocation2] sm:$0xff]
    %v25 = vld [vmem:[%s1] sm:$0x1]
    %v27 = vlaneseq
    %v28 = vshrl.u32 %v27, 7
    %v29 = vsub.s32 0, %v28
    %v30 = vrot.slane %v25, %v29
    %v32 = vmul.f32 %v24, %v30
    %v33 = vand.u32 2147483647, %v32
    %vm34 = vcmp.le.f32.partialorder %v33, 0.7853982
    %vm35 = vcmp.lt.s32.totalorder %v32, 0
    %v36 = vand.u32 %v32, 2139095040
    %v37 = vshrl.u32 %v36, 23
    %v38 = vsub.s32 %v37, 127
    %v39 = vand.u32 2147483647, %v32
    %v40 = vand.u32 %v39, 8388607
    %v41 = vor.u32 %v40, 8388608
    %v42 = vsub.s32 0, %v41
    %v43 = vadd.s32 %v38, 1
    %vm44 = vcmp.gt.s32.totalorder %v43, 0
    %v45 = vsel %vm44, %v43, 0
    %v46 = vshrl.u32 %v45, 5
    %v47 = vand.u32 %v45, 31
    %v48 = vsub.s32 32, %v47
    %v49 = vshrl.u32 683565275, %v48
    %v50 = vshll.u32 683565275, %v47
    %v51 = vshrl.u32 2475754826, %v48
    %v52 = vor.u32 %v50, %v51
    %v53 = vshll.u32 2475754826, %v47
    %v54 = vshrl.u32 2131351028, %v48
    %v55 = vor.u32 %v53, %v54
    %v56 = vshll.u32 2131351028, %v47
    %v57 = vshrl.u32 2102212464, %v48
    %v58 = vor.u32 %v56, %v57
    %v59 = vshll.u32 2102212464, %v47
    %v60 = vshrl.u32 920167782, %v48
    %v61 = vor.u32 %v59, %v60
    %v62 = vshll.u32 920167782, %v47
    %v63 = vshrl.u32 1326507024, %v48
    %v64 = vor.u32 %v62, %v63
    %vm65 = vcmp.lt.s32.totalorder %v46, 1
    %vm66 = vcmp.lt.s32.totalorder %v46, 2
    %vm67 = vcmp.lt.s32.totalorder %v46, 3
    %vm68 = vcmp.lt.s32.totalorder %v46, 4
    %v69 = vsel %vm65, %v49, %v52
    %v70 = vsel %vm68, %v58, 2102212464
    %v71 = vsel %vm67, %v55, %v70
    %v72 = vsel %vm66, %v69, %v71
    %v73 = vsel %vm65, %v52, %v55
    %v74 = vsel %vm68, %v61, 920167782
    %v75 = vsel %vm67, %v58, %v74
    %v76 = vsel %vm66, %v73, %v75
    %v77 = vsel %vm65, %v55, %v58
    %v78 = vsel %vm68, %v64, 1326507024
    %v79 = vsel %vm67, %v61, %v78
    %v80 = vsel %vm66, %v77, %v79
    %v81 = vshll.u32 %v41, 8
    %v82 = vmul.u32.u64.compose %v81, %v80
    %v83 = vextract.low.u32 %v82
    %v84 = vextract.high.u32 %v82
    %v85 = vmul.u32.u64.compose %v81, %v76
    %v86 = vextract.low.u32 %v85
    %v87 = vextract.high.u32 %v85
    %v88 = vmul.u32 %v81, %v72
    %v89 = vadd.s32 %v84, %v86
    %vm90 = vc.u32 %v84, %v86
    %v91 = vadd.s32 %v87, 1
    %v92 = vsel %vm90, %v91, %v87
    %v93 = vadd.s32 %v88, %v92
    %v94 = vadd.s32 %v93, 536870912
    %v95 = vshrl.u32 %v94, 30
    %v96 = vshll.u32 %v95, 30
    %v97 = vsub.s32 %v93, %v96
    %vm98 = vcmp.lt.s32.totalorder %v97, 0
    %v99 = vsub.s32 0, %v97
    %v100 = vsel %vm98, %v99, %v97
    %v101 = vclz %v100
    %v102 = vsub.s32 %v101, 2
    %vm103 = vcmp.gt.s32.totalorder 0, %v102
    %v104 = vsel %vm103, 0, %v102
    %v105 = vsub.s32 32, %v104
    %v106 = vshll.u32 %v97, %v104
    %v107 = vshrl.u32 %v89, %v105
    %v108 = vor.u32 %v106, %v107
    %v109 = vsub.s32 4294967266, %v104
    %v110 = vadd.s32 %v109, 127
    %v111 = vshll.u32 %v110, 23
    %v112 = vor.u32 4788187, %v111
    %v113 = vand.u32 2147483647, %v112
    %v115 = vcvt.s32.f32 %v108
    %v116 = vmul.f32 %v115, %v113
    %v117 = vxor.u32 %v116, 2147483648
    %v118 = vsel %vm35, %v117, %v116
    %v119 = vsub.s32 4, %v95
    %v120 = vsel %vm35, %v119, %v95
    %v121 = vsel %vm34, %v32, %v118
    %v122 = vsel %vm34, 0, %v120
    %v123 = vcosq.f32.pop %v121
    %v124 = vsinq.f32.pop %v121
    %vm125 = vweird.f32 %v32
    %v126 = vadd.s32 %v122, 3
    %v127 = vand.u32 %v126, 3
    %vm128 = vcmp.lt.s32.totalorder %v127, 2
    %vm129 = vcmp.eq.s32.totalorder %v127, 0
    %v130 = vxor.u32 %v124, 2147483648
    %v131 = vsel %vm129, %v123, %v130
    %vm132 = vcmp.eq.s32.totalorder %v127, 2
    %v133 = vxor.u32 %v123, 2147483648
    %v134 = vsel %vm132, %v133, %v124
    %v135 = vsel %vm128, %v131, %v134
    %v136 = vsel %vm125, nan, %v135
    %137 = vst [vmem:[#allocation5] sm:$0xff] %v136
    // Predicated region
    $region14: #{tpu_custom_call.1} parent=1 // pred_check
      _
    $region15: #{tpu_custom_call.1} parent=1 // pred_check_branch
      %139 = sbr.rel (0) target = $region17
    $region16: #{tpu_custom_call.1} parent=1 // pred_region
      %s141 = ssub.s32 128, 128
      %142 = vsyncadd [#allocation4], %s141
      %s144 = sshll.u32 [#allocation5], 4
      %s145 = int_to_ptr.vmem [resolvable:$true] %s144
      %147 = dma.vmem_to_hbm [thread:$0]  %s145, 128, %s2, [#allocation4]
    $region17: #{tpu_custom_call.1} parent=1 // pred_fallthru
      _
    // Predicated region
    $region18: #{tpu_custom_call.1} parent=1 // pred_check
      _
    $region19: #{tpu_custom_call.1} parent=1 // pred_check_branch
      %149 = sbr.rel (0) target = $region21
    $region20: #{tpu_custom_call.1} parent=1 // pred_region
      %150 = dma.done [#allocation4], 128
    $region21: #{tpu_custom_call.1} parent=1 // pred_fallthru
      _
    %151 = vsyncpa [#allocation3], 1
    %152 = vsyncpa [#allocation4], 1

</llo_original>
